<compile_context>
chip_gen: v7x
topology: tpu7x:2x2x1
jax: 0.10.0
libtpu: 0.0.40
codegen_flags: <defaults>
</compile_context>

<pallas_src>
import functools

import jax
import jax.numpy as jnp
from jax import lax
from jax.experimental import pallas as pl
from jax.experimental.pallas import tpu as pltpu


def _round_up(x, m):
    return (x + m - 1) // m * m


# ------------------------- roll direction probe ------------------------------

_ROLL_SIGN = None


def _probe_roll_sign():
    """Returns +1 if pltpu.roll matches jnp.roll (out[i] = in[i - shift]), else -1."""
    def kern(x_ref, o_ref):
        o_ref[...] = pltpu.roll(x_ref[...], shift=1, axis=0)

    x = lax.broadcasted_iota(jnp.float32, (8, 128), 0)
    y = pl.pallas_call(kern, out_shape=jax.ShapeDtypeStruct((8, 128), jnp.float32))(x)
    return 1 if int(y[1, 0]) == 0 else -1


def _roll_sign():
    global _ROLL_SIGN
    if _ROLL_SIGN is None:
        _ROLL_SIGN = _probe_roll_sign()
    return _ROLL_SIGN


# ------------------------------ Pallas kernel --------------------------------

def _conv_bn_act_kernel(*refs, dh, dw, wa, ho, wo, relu, mode, sc_off, sc_wa,
                        pad_out, single_k, roll_sign):
    """Fused conv (aligned strip matmuls + XLU rolls) + BN + shortcut + ReLU.

    refs layout by `mode` (scratch accumulator only when not single_k):
      "none": (xg, w, scale, bias, out[, acc])
      "iden": (xg, w, scale, bias, xres, out[, acc])
      "proj": (xg, w, scale, bias, xsc, wsc, sc_scale, sc_bias, out[, acc])
    """
    if mode == "proj":
        (xg_ref, w_ref, s_ref, b_ref,
         xsc_ref, wsc_ref, ssc_ref, bsc_ref) = refs[:8]
        rest = refs[8:]
    elif mode == "iden":
        xg_ref, w_ref, s_ref, b_ref, xsc_ref = refs[:5]
        rest = refs[5:]
    else:
        xg_ref, w_ref, s_ref, b_ref = refs[:4]
        rest = refs[4:]
    if single_k:
        (out_ref,) = rest
        acc_ref = None
    else:
        out_ref, acc_ref = rest

    k = pl.program_id(2)
    m = ho * wa                                  # strip rows (wa % 8 == 0)

    # Zero the (spatially padded) output block once so its border is valid.
    if pad_out:
        @pl.when(k == 0)
        def _zero_out():
            out_ref[...] = jnp.zeros_like(out_ref)

    if acc_ref is not None:
        @pl.when(k == 0)
        def _zero_acc():
            acc_ref[...] = jnp.zeros_like(acc_ref)

    # Conv taps: for every tap column dj, sum the dh aligned full-width strip
    # matmuls, then realign once with a sublane roll (XLU).  Columns >= wo of
    # each row hold junk and are discarded at the epilogue.
    part = None
    for dj in range(dw):
        col = None
        for di in range(dh):
            xs = xg_ref[0, pl.ds(di * wa, m), :]               # 8-aligned slice
            d = jnp.dot(xs, w_ref[di * dw + dj],
                        preferred_element_type=jnp.float32)
            col = d if col is None else col + d
        if dj:
            col = pltpu.roll(col, shift=(-dj * roll_sign) % m, axis=0)
        part = col if part is None else part + col

    def _epilogue(acc):
        # acc: (ho*wa, tn) f32 -> keep only the wo valid columns of each row.
        y = acc.reshape(ho, wa, -1)[:, :wo, :]
        y = y * s_ref[...] + b_ref[...]                         # folded BN (f32)
        if mode != "none":
            oi, oj = sc_off
            msc = ho * sc_wa
            xs = xsc_ref[0, pl.ds(oi * sc_wa, msc), :]
            if mode == "proj":
                sc = jnp.dot(xs, wsc_ref[...], preferred_element_type=jnp.float32)
            else:
                sc = xs.astype(jnp.float32)
            if oj:
                sc = pltpu.roll(sc, shift=(-oj * roll_sign) % msc, axis=0)
            sc = sc.reshape(ho, sc_wa, -1)[:, :wo, :]
            if mode == "proj":
                y = y + sc * ssc_ref[...] + bsc_ref[...]        # shortcut BN
            else:
                y = y + sc                                      # identity
        if relu:
            y = jnp.maximum(y, 0.0)
        y = y.astype(out_ref.dtype)
        if pad_out:
            out_ref[0, pl.ds(pad_out, ho), pl.ds(pad_out, wo), :] = y
        else:
            out_ref[0] = y

    if single_k:
        _epilogue(part)
    else:
        acc_ref[...] += part

        @pl.when(k == pl.num_programs(2) - 1)
        def _last():
            _epilogue(acc_ref[...])


# ------------------------------ pallas_call glue ------------------------------

def fused_conv_bn(xg, w_taps, scale, bias, *, n_imgs, groups, dh, dw,
                  ha, wa, ho, wo, cout, relu, out_dtype,
                  pad_out=0, out_hw=None, shortcut=None):
    """One fused Conv + BN (+ identity | fused 1x1-conv shortcut) (+ ReLU)."""
    ng, m_in, cin = xg.shape
    assert ng == n_imgs * groups and m_in == ha * wa
    assert wa % 8 == 0
    assert dh - 1 + ho <= ha and dw - 1 + wo <= wa
    assert w_taps.shape == (groups * dh * dw, cin, cout)

    # cout tile: 256 feeds the 256-wide MXU (v6e/v7x); small / odd channel
    # counts stay unpadded (block == full array dim -> no zero-pad HBM / MXU work).
    if cout % 256 == 0:
        tn = 256
    elif cout % 128 == 0:
        tn = 128
    else:
        tn = cout
    n_ct = cout // tn
    grid = (n_ct, n_imgs, groups)
    single_k = groups == 1

    in_specs = [
        pl.BlockSpec((1, ha * wa, cin), lambda c, n, k: (n * groups + k, 0, 0)),
        pl.BlockSpec((dh * dw, cin, tn), lambda c, n, k: (k, 0, c)),
        pl.BlockSpec((1, tn), lambda c, n, k: (0, c)),
        pl.BlockSpec((1, tn), lambda c, n, k: (0, c)),
    ]
    args = [xg, w_taps, scale, bias]

    mode, sc_off, sc_wa = "none", None, None
    bpe = jnp.dtype(xg.dtype).itemsize
    x_block = ha * wa * cin * bpe
    w_block = dh * dw * cin * tn * bpe
    flops = 2 * n_imgs * groups * (ho * wa) * cin * cout * dh * dw

    if shortcut is not None:
        xsc = shortcut["x"]
        sc_groups, g_sc = shortcut["groups"], shortcut["g"]
        sc_wa, sc_off = shortcut["wa"], shortcut["off"]
        _, msc_in, csc = xsc.shape
        sc_ha = msc_in // sc_wa
        assert sc_off[0] + ho <= sc_ha and sc_off[1] + wo <= sc_wa
        if shortcut.get("w") is not None:
            mode = "proj"
            in_specs += [
                pl.BlockSpec((1, msc_in, csc),
                             lambda c, n, k: (n * sc_groups + g_sc, 0, 0)),
                pl.BlockSpec((csc, tn), lambda c, n, k: (0, c)),
                pl.BlockSpec((1, tn), lambda c, n, k: (0, c)),
                pl.BlockSpec((1, tn), lambda c, n, k: (0, c)),
            ]
            args += [xsc, shortcut["w"], shortcut["s"], shortcut["b"]]
            flops += 2 * n_imgs * ho * sc_wa * csc * cout
        else:
            mode = "iden"
            assert csc == cout
            in_specs.append(
                pl.BlockSpec((1, msc_in, tn),
                             lambda c, n, k: (n * sc_groups + g_sc, 0, c)))
            args.append(xsc)

    oh, ow = out_hw if pad_out else (ho, wo)
    out_shape = jax.ShapeDtypeStruct((n_imgs, oh, ow, cout), out_dtype)
    out_spec = pl.BlockSpec((1, oh, ow, tn), lambda c, n, k: (n, 0, 0, c))
    out_block = oh * ow * tn * jnp.dtype(out_dtype).itemsize

    scratch = [] if single_k else [pltpu.VMEM((ho * wa, tn), jnp.float32)]

    # Advisory cost estimate (xg is re-read once per cout tile) + VMEM budget.
    bytes_accessed = (n_ct * n_imgs * groups * x_block
                      + n_ct * (n_imgs * groups if groups > 1 else 1) * w_block
                      + n_imgs * n_ct * out_block
                      + 2 * cout * 4)
    vmem_est = 2 * (x_block + w_block + out_block)
    vmem_est += 0 if single_k else ho * wa * tn * 4
    if mode == "proj":
        sc_bytes = msc_in * csc * bpe + csc * tn * bpe
        bytes_accessed += n_ct * n_imgs * sc_bytes
        vmem_est += 2 * sc_bytes
    elif mode == "iden":
        sc_bytes = msc_in * tn * bpe
        bytes_accessed += n_ct * n_imgs * sc_bytes
        vmem_est += 2 * sc_bytes

    cp_kwargs = dict(dimension_semantics=("parallel", "parallel", "arbitrary"))
    if vmem_est > 12 * 2**20:
        # Explicit budget (capped at v7x's 64 MiB physical VMEM).
        cp_kwargs["vmem_limit_bytes"] = int(
            min(max(2 * vmem_est, 32 * 2**20), 64 * 2**20))

    kernel = functools.partial(
        _conv_bn_act_kernel, dh=dh, dw=dw, wa=wa, ho=ho, wo=wo, relu=relu,
        mode=mode, sc_off=sc_off, sc_wa=sc_wa, pad_out=pad_out,
        single_k=single_k, roll_sign=_roll_sign())

    return pl.pallas_call(
        kernel,
        out_shape=out_shape,
        grid_spec=pltpu.PrefetchScalarGridSpec(
            num_scalar_prefetch=0,
            grid=grid,
            in_specs=in_specs,
            out_specs=out_spec,
            scratch_shapes=scratch),
        compiler_params=pltpu.CompilerParams(**cp_kwargs),
        cost_estimate=pl.CostEstimate(flops=int(flops), transcendentals=0,
                                      bytes_accessed=int(bytes_accessed)),
    )(*args)


# ------------------------------- host-side glue -------------------------------

def _space_to_depth(x_nhwc, stride, pad, dtype):
    """(N,H,W,C) -> (N*stride^2, ha*wa, C) parity planes of the padded input.

    Plane g = r*stride + c holds xpad[:, r::stride, c::stride, :]; the plane
    width wa is rounded up to a multiple of 8 so every in-kernel strip slice /
    reshape is layout-preserving.
    """
    n, h, w, ch = x_nhwc.shape
    hp, wp = h + 2 * pad, w + 2 * pad
    ha = -(-hp // stride)
    wa = _round_up(-(-wp // stride), 8)
    hp2, wp2 = ha * stride, wa * stride
    xp = jnp.pad(x_nhwc.astype(dtype),
                 ((0, 0), (pad, hp2 - hp + pad), (pad, wp2 - wp + pad), (0, 0)))
    xg = xp.reshape(n, ha, stride, wa, stride, ch)
    xg = jnp.transpose(xg, (0, 2, 4, 1, 3, 5))          # (n, r, c, ha, wa, ch)
    return xg.reshape(n * stride * stride, ha * wa, ch), (ha, wa)


def _prep_conv_weight(w_hwio, stride, dtype):
    """(kh,kw,cin,cout) -> (groups*dh*dw, cin, cout) per-parity tap layout."""
    kh, kw, cin, cout = w_hwio.shape
    dh, dw = -(-kh // stride), -(-kw // stride)
    zero = jnp.zeros((cin, cout), w_hwio.dtype)
    taps = []
    for r in range(stride):
        for c in range(stride):
            for di in range(dh):
                for dj in range(dw):
                    i, j = stride * di + r, stride * dj + c
                    taps.append(w_hwio[i, j] if (i < kh and j < kw) else zero)
    return jnp.stack(taps).astype(dtype), dh, dw


def _fold_bn(bn, eps=1e-5):
    scale = bn["gamma"] / jnp.sqrt(bn["var"] + eps)
    bias = bn["beta"] - bn["mean"] * scale
    return (scale.reshape(1, -1).astype(jnp.float32),
            bias.reshape(1, -1).astype(jnp.float32))


def prepare_params(params, stride, compute_dtype=jnp.bfloat16):
    """One-time weight re-layout + BN folding (hoisted out of the forward path)."""
    kh, _, cin, planes = params["w1"].shape
    w1, dh1, dw1 = _prep_conv_weight(params["w1"], stride, compute_dtype)
    w2, dh2, dw2 = _prep_conv_weight(params["w2"], 1, compute_dtype)
    s1, b1 = _fold_bn(params["bn1"])
    s2, b2 = _fold_bn(params["bn2"])
    prep = dict(w1=w1, s1=s1, b1=b1, w2=w2, s2=s2, b2=b2)
    meta = dict(kh=kh, cin=cin, planes=planes,
                dh1=dh1, dw1=dw1, dh2=dh2, dw2=dw2,
                has_proj=params.get("wsc") is not None)
    if meta["has_proj"]:
        prep["wsc"] = params["wsc"][0, 0].astype(compute_dtype)    # (cin, planes)
        prep["ssc"], prep["bsc"] = _fold_bn(params["bnsc"])
    _roll_sign()   # warm the roll-direction probe outside any trace
    return prep, meta


def basic_block_forward(x_nchw, prep, *, stride, meta,
                        compute_dtype=jnp.bfloat16, out_dtype=jnp.bfloat16):
    """Matches BasicBlock.forward (NCHW in, NCHW out), eval-mode BatchNorm."""
    n, cin, h, w = x_nchw.shape
    kh, planes = meta["kh"], meta["planes"]
    assert cin == meta["cin"]
    pad = (kh - 1) // 2
    ho = (h + 2 * pad - kh) // stride + 1
    wo = (w + 2 * pad - kh) // stride + 1

    x = jnp.transpose(x_nchw, (0, 2, 3, 1))              # NHWC, unpadded channels
    xg1, (ha1, wa1) = _space_to_depth(x, stride, pad, compute_dtype)

    # ---- conv1 + bn1 + relu: writes a zero-bordered, spatially padded output
    # so conv2 consumes it directly (no pad pass over the intermediate). ----
    ha2, wa2 = ho + 2 * pad, _round_up(wo + 2 * pad, 8)
    out1 = fused_conv_bn(
        xg1, prep["w1"], prep["s1"], prep["b1"],
        n_imgs=n, groups=stride * stride, dh=meta["dh1"], dw=meta["dw1"],
        ha=ha1, wa=wa1, ho=ho, wo=wo, cout=planes, relu=True,
        out_dtype=compute_dtype, pad_out=pad, out_hw=(ha2, wa2))

    xg2 = out1.reshape(n, ha2 * wa2, planes)             # free: already padded

    # ---- conv2 + bn2 + shortcut + relu.  The shortcut (1x1-conv projection or
    # identity) reuses conv1's parity planes: no extra HBM stream for x. ----
    if meta["has_proj"]:
        r = pad % stride
        shortcut = dict(x=xg1, groups=stride * stride, g=r * stride + r,
                        wa=wa1, off=(pad // stride, pad // stride),
                        w=prep["wsc"], s=prep["ssc"], b=prep["bsc"])
    else:
        assert stride == 1 and cin == planes
        shortcut = dict(x=xg1, groups=1, g=0, wa=wa1, off=(pad, pad), w=None)
    out2 = fused_conv_bn(
        xg2, prep["w2"], prep["s2"], prep["b2"],
        n_imgs=n, groups=1, dh=meta["dh2"], dw=meta["dw2"],
        ha=ha2, wa=wa2, ho=ho, wo=wo, cout=planes, relu=True,
        out_dtype=out_dtype, shortcut=shortcut)

    return jnp.transpose(out2, (0, 3, 1, 2))             # NCHW (bf16 by default)


# ----------------------------- pure-JAX reference -----------------------------

def _ref_conv_bn(x_nchw, w_hwio, bn, stride, cast=None, eps=1e-5):
    def mc(a):
        return a.astype(cast).astype(jnp.float32) if cast is not None else a
    xc, wc = mc(x_nchw), mc(w_hwio)
    w_oihw = jnp.transpose(wc, (3, 2, 0, 1))
    pad = (w_hwio.shape[0] - 1) // 2
    y = lax.conv_general_dilated(
        xc, w_oihw, (stride, stride), ((pad, pad), (pad, pad)),
        dimension_numbers=("NCHW", "OIHW", "NCHW"),
        precision=lax.Precision.HIGHEST)
    inv = bn["gamma"] / jnp.sqrt(bn["var"] + eps)
    return (y * inv.reshape(1, -1, 1, 1)
            + (bn["beta"] - bn["mean"] * inv).reshape(1, -1, 1, 1))


def ref_basic_block(x_nchw, params, stride, cast=None):
    o = jax.nn.relu(_ref_conv_bn(x_nchw, params["w1"], params["bn1"], stride, cast))
    o = _ref_conv_bn(o, params["w2"], params["bn2"], 1, cast)
    if params.get("wsc") is not None:
        sc = _ref_conv_bn(x_nchw, params["wsc"], params["bnsc"], stride, cast)
    else:
        sc = x_nchw
    return jax.nn.relu(o + sc)


# ------------------------------------ main ------------------------------------

def _init_bn(key, c):
    k1, k2, k3, k4 = jax.random.split(key, 4)
    return dict(
        gamma=jax.random.uniform(k1, (c,), jnp.float32, 0.5, 1.5),
        beta=0.1 * jax.random.normal(k2, (c,), jnp.float32),
        mean=0.1 * jax.random.normal(k3, (c,), jnp.float32),
        var=jax.random.uniform(k4, (c,), jnp.float32, 0.5, 1.5),
    )


def _make_params(key, in_planes, planes, stride):
    keys = jax.random.split(key, 6)
    params = dict(
        w1=0.1 * jax.random.normal(keys[0], (3, 3, in_planes, planes), jnp.float32),
        w2=0.1 * jax.random.normal(keys[1], (3, 3, planes, planes), jnp.float32),
        bn1=_init_bn(keys[2], planes),
        bn2=_init_bn(keys[3], planes),
        wsc=None, bnsc=None,
    )
    if stride != 1 or in_planes != planes:
        params["wsc"] = 0.1 * jax.random.normal(
            keys[4], (1, 1, in_planes, planes), jnp.float32)
        params["bnsc"] = _init_bn(keys[5], planes)
    return params


if __name__ == "__main__":
    key = jax.random.PRNGKey(0)
    batch, hw = 2, 16

    # (in_planes, planes, stride): projection-shortcut and identity-shortcut paths.
    cases = [(4, 8, 2), (8, 8, 1)]

    for idx, (in_planes, planes, stride) in enumerate(cases):
        case_key = jax.random.fold_in(key, idx)
        kx, kp = jax.random.split(case_key)
        x = jax.random.normal(kx, (batch, in_planes, hw, hw), jnp.float32)
        params = _make_params(kp, in_planes, planes, stride)

        # Weight/BN prep runs once (hoisted out of the per-forward path).
        prep, meta = prepare_params(params, stride)

        fwd = jax.jit(functools.partial(basic_block_forward,
                                        stride=stride, meta=meta))
        out = jax.block_until_ready(fwd(x, prep)).astype(jnp.float32)

        # Tight check: bf16-rounded reference (inputs, intermediate activation
        # and final store all rounded like the kernel path).
        ref_bf = ref_basic_block(x, params, stride, cast=jnp.bfloat16)
        ref_bf = jax.block_until_ready(
            ref_bf.astype(jnp.bfloat16).astype(jnp.float32))
        # Loose check: full-f32 reference bounds the bf16 quantization error.
        ref32 = jax.block_until_ready(ref_basic_block(x, params, stride))

        assert out.shape == ref32.shape, (out.shape, ref32.shape)
        err_tight = float(jnp.max(jnp.abs(out - ref_bf)))
        err_loose = float(jnp.max(jnp.abs(out - ref32)))
        assert err_tight < 2.5e-2, ("tight", idx, err_tight)
        assert err_loose < 1.5e-1, ("loose", idx, err_loose)

    print("KERNEL_OK")
</pallas_src>

<mosaic_0001>
module attributes {stable_mosaic.version = 11 : i64} {
  func.func @kern(%arg0: memref<8x128xf32, #tpu.memory_space<vmem>>, %arg1: memref<8x128xf32, #tpu.memory_space<vmem>>) attributes {dimension_semantics = [], scalar_prefetch = 0 : i64, scratch_operands = 0 : i64, tpu.core_type = #tpu.core_type<tc>} {
    %c0 = arith.constant 0 : index
    %c0_0 = arith.constant 0 : index
    %0 = vector.load %arg0[%c0, %c0_0] : memref<8x128xf32, #tpu.memory_space<vmem>>, vector<8x128xf32>
    %c1_i32 = arith.constant 1 : i32
    %1 = tpu.dynamic_rotate %0 by %c1_i32 dim 0 : vector<8x128xf32>, i32 -> vector<8x128xf32>
    %c0_1 = arith.constant 0 : index
    %c0_2 = arith.constant 0 : index
    %2 = vector.load %arg1[%c0_1, %c0_2] : memref<8x128xf32, #tpu.memory_space<vmem>>, vector<8x128xf32>
    tpu.vector_store %arg1[%c0_1, %c0_2], %1 {strides = array<i32>} : memref<8x128xf32, #tpu.memory_space<vmem>>, vector<8x128xf32>,
    return
  }
}

</mosaic_0001>

<llo_original>
// kernel: tpu_custom_call.1
$region0: #{tpu_custom_call.1}
  #allocation0 [shape = 'u32[]', space=smem, size = 0x4, offset = 0x4, fixed_abs, tag = 'smem constant byte address 0x4 - core index']
  #allocation1 [shape = 'u32[144,128]{1,0:T(1,128)}', space=vmem, size = 0x12000, scoped, tag = 'internal scratch']
  %s0 = inlined_call_operand.hbm [shape: f32[8,128], index: 0, kind: input, shape index: {}]
  %s1 = inlined_call_operand.hbm [shape: f32[8,128], index: 1, kind: output, shape index: {}]
  %s2 = sld [smem:[#allocation0]]
  $region18: #{tpu_custom_call.1} parent=0
    _
  %s4 = ssub.s32 1, %s2
  %s5 = scalar_select 0, %s4, %s2
  $region1: #{tpu_custom_call.1} parent=0
    #allocation2 [shape = 'u8[4096]{0}', space=vmem, size = 0x1000, scoped, tag = 'input window, operand 0, single buffered']
    #allocation3 [shape = 's32[1]{0}', space=sflag, size = 0x4, scoped, tag = 'scoped memory for tpu_custom_call.1']
    #allocation4 [shape = 's32[1]{0}', space=sflag, size = 0x4, scoped, tag = 'scoped memory for tpu_custom_call.1']
    #allocation5 [shape = 'u8[4096]{0}', space=vmem, size = 0x1000, scoped, tag = 'output window, operand 0, single buffered']
    %6 = vsyncpa [#allocation3], 0
    %7 = vsyncpa [#allocation4], 0
    // Predicated region
    $region2: #{tpu_custom_call.1} parent=1 // pred_check
      _
    $region3: #{tpu_custom_call.1} parent=1 // pred_check_branch
      %9 = sbr.rel (0) target = $region5
    $region4: #{tpu_custom_call.1} parent=1 // pred_region
      %s11 = ssub.s32 128, 128
      %12 = vsyncadd [#allocation3], %s11
      %s14 = sshll.u32 [#allocation2], 4
      %s15 = int_to_ptr.vmem [resolvable:$true] %s14
      %17 = dma.hbm_to_vmem [thread:$0]  %s0, 128, %s15, [#allocation3]
    $region5: #{tpu_custom_call.1} parent=1 // pred_fallthru
      _
    // Predicated region
    $region6: #{tpu_custom_call.1} parent=1 // pred_check
      _
    $region7: #{tpu_custom_call.1} parent=1 // pred_check_branch
      %19 = sbr.rel (0) target = $region9
    $region8: #{tpu_custom_call.1} parent=1 // pred_region
      %20 = dma.done [#allocation3], 128
    $region9: #{tpu_custom_call.1} parent=1 // pred_fallthru
      _
    %v21 = vld [vmem:[#allocation2] sm:$0xff]
    %v22 = vrot.slane %v21, 7
    %23 = vst [vmem:[#allocation5] sm:$0xff] %v22
    // Predicated region
    $region10: #{tpu_custom_call.1} parent=1 // pred_check
      _
    $region11: #{tpu_custom_call.1} parent=1 // pred_check_branch
      %25 = sbr.rel (0) target = $region13
    $region12: #{tpu_custom_call.1} parent=1 // pred_region
      %s27 = ssub.s32 128, 128
      %28 = vsyncadd [#allocation4], %s27
      %s30 = sshll.u32 [#allocation5], 4
      %s31 = int_to_ptr.vmem [resolvable:$true] %s30
      %33 = dma.vmem_to_hbm [thread:$0]  %s31, 128, %s1, [#allocation4]
    $region13: #{tpu_custom_call.1} parent=1 // pred_fallthru
      _
    // Predicated region
    $region14: #{tpu_custom_call.1} parent=1 // pred_check
      _
    $region15: #{tpu_custom_call.1} parent=1 // pred_check_branch
      %35 = sbr.rel (0) target = $region17
    $region16: #{tpu_custom_call.1} parent=1 // pred_region
      %36 = dma.done [#allocation4], 128
    $region17: #{tpu_custom_call.1} parent=1 // pred_fallthru
      _
    %37 = vsyncpa [#allocation3], 1
    %38 = vsyncpa [#allocation4], 1

</llo_original>
